<compile_context>
chip_gen: v6e
topology: v6e:2x2x1
jax: 0.10.0
libtpu: 0.0.40
codegen_flags: <defaults>
</compile_context>

<pallas_src>
import functools

import jax
import jax.numpy as jnp
import numpy as np
from jax.experimental import pallas as pl
from jax.experimental.pallas import tpu as pltpu

# Fixed architecture constants from the PyTorch module.
CONV1_OUT = 64      # nn.Conv2d(1, 64, 2, 1)
KH = KW = 2         # 2x2 kernels, stride 1
IN_H = IN_W = 4     # 4x4 board -> conv1: 3x3 -> conv2: 2x2 -> 4*hidden features
HEAD_PAD = 128      # lane-tile aligned width of each action/value head segment


def c51_kernel(x1_ref, w1_ref, b1_ref, w2_ref, b2_ref, wh_ref, bh_ref, out_ref,
               *, batch, actions, atoms, seg, log):
    B, A = batch, actions
    C1 = CONV1_OUT
    f32 = jnp.float32

    # ---- conv1 + ReLU: ONE im2col matmul. h1 rows ordered p1*B + b (p1 = i*3+j).
    h1 = jnp.maximum(
        jnp.dot(x1_ref[...], w1_ref[...], preferred_element_type=f32) + b1_ref[...],
        0.0)                                                         # (9B, C1)

    # ---- conv2 + ReLU: assemble the (4B, 4*C1) operand IN REGISTERS
    #      (taps along K, positions along M), then one matmul with K=256.
    pos_blocks = []
    for oi in range(2):
        for oj in range(2):
            taps = []
            for dy in range(2):
                for dx in range(2):
                    p1 = (oi + dy) * 3 + (oj + dx)
                    taps.append(h1[p1 * B:(p1 + 1) * B, :])          # (B, C1)
            pos_blocks.append(jnp.concatenate(taps, axis=1))         # (B, 4*C1)
    x2 = jnp.concatenate(pos_blocks, axis=0)                         # (4B, 4*C1)
    h2 = jnp.maximum(
        jnp.dot(x2, w2_ref[...], preferred_element_type=f32) + b2_ref[...],
        0.0)                                                         # (4B, H)

    # ---- flatten: feat[b, p*H + c] = h2[p*B + b, c]  (register lane-concat).
    feat = jnp.concatenate([h2[p * B:(p + 1) * B, :] for p in range(4)], axis=1)

    # ---- fused dueling head: (B, 4H) @ (4H, (A+1)*seg).  Each segment is
    #      zero-padded to `seg`=128 columns so the slices below are lane-aligned.
    head = jnp.dot(feat, wh_ref[...], preferred_element_type=f32) + bh_ref[...]

    adv = [head[:, a * seg:(a + 1) * seg] for a in range(A)]         # A x (B, seg)
    v = head[:, A * seg:(A + 1) * seg]                               # (B, seg)
    a_sum = adv[0]
    for a in range(1, A):
        a_sum = a_sum + adv[a]
    c = v - a_sum * (1.0 / A)                                        # v - mean_a(adv)

    # ---- stack all (action, batch) rows action-major in registers and run ONE
    #      softmax chain.  Pad lanes are masked so the sum only sees real atoms.
    q = jnp.concatenate([adv[a] + c for a in range(A)], axis=0)      # (A*B, seg)
    col = jax.lax.broadcasted_iota(jnp.int32, q.shape, 1)
    q = jnp.where(col < atoms, q, -1e30)
    m = jnp.max(q, axis=-1, keepdims=True)
    e = jnp.exp(q - m)
    s = jnp.sum(e, axis=-1, keepdims=True)
    if log:
        out_ref[...] = (q - m) - jnp.log(s)
    else:
        out_ref[...] = e * pl.reciprocal(s, approx=False)


def prepare_kernel_params(params, *, hidden_size, action_size, atoms):
    """PyTorch-layout params -> kernel layouts.  Call ONCE and reuse per forward."""
    (w1, b1, w2, b2, W_af, b_af, W_vf, b_vf) = params
    H, A, seg = hidden_size, action_size, HEAD_PAD

    w1_k = w1.reshape(CONV1_OUT, 4).T                                 # (tap, cout)
    b1_k = b1.reshape(1, CONV1_OUT)
    # conv2 weight with taps concatenated on the input axis: row = tap*C1 + cin.
    w2_k = jnp.transpose(w2, (2, 3, 1, 0)).reshape(4 * CONV1_OUT, H)  # (4*C1, H)
    b2_k = b2.reshape(1, H)

    # Fused head weight.  Kernel feature index = p*H + c, PyTorch flatten = c*4 + p.
    # Each per-action / value segment is zero-padded to `seg` lanes (aligned slices).
    wa = jnp.transpose(W_af.reshape(A, atoms, H, 4), (0, 3, 2, 1))    # (A, 4, H, atoms)
    wa = wa.reshape(A, 4 * H, atoms)
    wa = jnp.pad(wa, ((0, 0), (0, 0), (0, seg - atoms)))              # (A, 4H, seg)
    wa = jnp.transpose(wa, (1, 0, 2)).reshape(4 * H, A * seg)
    wv = jnp.transpose(W_vf.reshape(atoms, H, 4), (2, 1, 0)).reshape(4 * H, atoms)
    wv = jnp.pad(wv, ((0, 0), (0, seg - atoms)))                      # (4H, seg)
    wh_k = jnp.concatenate([wa, wv], axis=1)                          # (4H, (A+1)*seg)

    ba = jnp.pad(b_af.reshape(A, atoms), ((0, 0), (0, seg - atoms))).reshape(A * seg)
    bv = jnp.pad(b_vf, (0, seg - atoms))
    bh_k = jnp.concatenate([ba, bv]).reshape(1, (A + 1) * seg)

    return (w1_k, b1_k, w2_k, b2_k, wh_k, bh_k)


def c51_forward_pallas(x_nchw, kparams, *, hidden_size, action_size, atoms, log=False):
    B, A, seg = x_nchw.shape[0], action_size, HEAD_PAD
    (w1_k, b1_k, w2_k, b2_k, wh_k, bh_k) = kparams

    # conv1 im2col patches: row = (i*3 + j)*B + b, column = tap (dy*2 + dx).
    xs = x_nchw.reshape(B, IN_H, IN_W).astype(jnp.float32)
    pats = [jnp.stack([xs[:, i + dy, j + dx] for dy in range(2) for dx in range(2)],
                      axis=1)
            for i in range(3) for j in range(3)]
    x1 = jnp.concatenate(pats, axis=0)                                # (9B, 4)

    vmem = pl.BlockSpec(memory_space=pltpu.MemorySpace.VMEM)
    out = pl.pallas_call(
        functools.partial(c51_kernel, batch=B, actions=A, atoms=atoms,
                          seg=seg, log=log),
        out_shape=jax.ShapeDtypeStruct((A * B, seg), jnp.float32),    # lane-dense slab
        in_specs=[vmem] * 7,
        out_specs=vmem,
    )(x1, w1_k, b1_k, w2_k, b2_k, wh_k, bh_k)
    # action-major rows -> tiny (A,B,seg) transpose + slice back to real atoms.
    return out.reshape(A, B, seg).transpose(1, 0, 2)[:, :, :atoms]


def init_params(key, hidden_size, action_size, atoms, std_init=0.5):
    """Deterministic synthetic parameters in PyTorch shapes (training-mode NoisyLinear)."""
    H, A = hidden_size, action_size
    in_feats = 4 * H
    ks = jax.random.split(key, 12)
    u = lambda k, shape, bound: jax.random.uniform(k, shape, jnp.float32, -bound, bound)

    k1 = 1.0 / np.sqrt(1 * KH * KW)
    w1 = u(ks[0], (CONV1_OUT, 1, KH, KW), k1)
    b1 = u(ks[1], (CONV1_OUT,), k1)
    k2 = 1.0 / np.sqrt(CONV1_OUT * KH * KW)
    w2 = u(ks[2], (H, CONV1_OUT, KH, KW), k2)
    b2 = u(ks[3], (H,), k2)

    def noisy(kw, kb, ki, ko, out_f):
        mu_range = 1.0 / np.sqrt(in_feats)
        w_mu = u(kw, (out_f, in_feats), mu_range)
        w_sig = jnp.full((out_f, in_feats), std_init / np.sqrt(in_feats), jnp.float32)
        b_mu = u(kb, (out_f,), mu_range)
        b_sig = jnp.full((out_f,), std_init / np.sqrt(out_f), jnp.float32)
        eps_in = jax.random.normal(ki, (in_feats,), jnp.float32)
        eps_out = jax.random.normal(ko, (out_f,), jnp.float32)
        # training-mode effective parameters (nn.Module default is train())
        W = w_mu + w_sig * jnp.outer(eps_out, eps_in)
        b = b_mu + b_sig * eps_out
        return W, b

    W_af, b_af = noisy(ks[4], ks[5], ks[6], ks[7], A * atoms)
    W_vf, b_vf = noisy(ks[8], ks[9], ks[10], ks[11], atoms)
    return (w1, b1, w2, b2, W_af, b_af, W_vf, b_vf)


def c51_forward_ref(x, params, *, action_size, atoms, log=False):
    """Pure-JAX reference mirroring the PyTorch forward (NCHW semantics)."""
    (w1, b1, w2, b2, W_af, b_af, W_vf, b_vf) = params
    B = x.shape[0]
    dn = ('NCHW', 'OIHW', 'NCHW')
    h = jax.lax.conv_general_dilated(x, w1, (1, 1), 'VALID', dimension_numbers=dn)
    h = jnp.maximum(h + b1[None, :, None, None], 0.0)
    h = jax.lax.conv_general_dilated(h, w2, (1, 1), 'VALID', dimension_numbers=dn)
    h = jnp.maximum(h + b2[None, :, None, None], 0.0)
    feat = h.reshape(B, -1)
    a = (feat @ W_af.T + b_af).reshape(B, action_size, atoms)
    v = (feat @ W_vf.T + b_vf).reshape(B, 1, atoms)
    q = v + a - a.mean(axis=1, keepdims=True)
    if log:
        return jax.nn.log_softmax(q, axis=2)
    return jax.nn.softmax(q, axis=2)


if __name__ == "__main__":
    hidden_size, action_size, atoms = 32, 4, 51
    batch = 2
    key = jax.random.PRNGKey(0)
    kx, kp = jax.random.split(key)

    x = jax.random.normal(kx, (batch, 1, IN_H, IN_W), jnp.float32)   # NCHW, like PyTorch
    params = init_params(kp, hidden_size, action_size, atoms)
    # One-time weight permutation (cached; NOT part of the per-call wrapper).
    kparams = jax.tree_util.tree_map(
        jax.block_until_ready,
        prepare_kernel_params(params, hidden_size=hidden_size,
                              action_size=action_size, atoms=atoms))

    fwd_prob = jax.jit(functools.partial(
        c51_forward_pallas, hidden_size=hidden_size, action_size=action_size,
        atoms=atoms, log=False))
    fwd_log = jax.jit(functools.partial(
        c51_forward_pallas, hidden_size=hidden_size, action_size=action_size,
        atoms=atoms, log=True))

    # softmax path
    probs = jax.block_until_ready(fwd_prob(x, kparams))
    ref = c51_forward_ref(x, params, action_size=action_size, atoms=atoms, log=False)
    np.testing.assert_allclose(np.asarray(probs), np.asarray(ref), rtol=1e-3, atol=2e-4)
    assert probs.shape == (batch, action_size, atoms)

    # log-softmax path
    logp = jax.block_until_ready(fwd_log(x, kparams))
    ref_log = c51_forward_ref(x, params, action_size=action_size, atoms=atoms, log=True)
    np.testing.assert_allclose(np.asarray(logp), np.asarray(ref_log), rtol=1e-3, atol=5e-4)

    print("KERNEL_OK")
</pallas_src>

<mosaic_0001>
module attributes {stable_mosaic.version = 11 : i64} {
  func.func @c51_kernel(%arg0: memref<18x4xf32, #tpu.memory_space<vmem>>, %arg1: memref<4x64xf32, #tpu.memory_space<vmem>>, %arg2: memref<1x64xf32, #tpu.memory_space<vmem>>, %arg3: memref<256x32xf32, #tpu.memory_space<vmem>>, %arg4: memref<1x32xf32, #tpu.memory_space<vmem>>, %arg5: memref<128x640xf32, #tpu.memory_space<vmem>>, %arg6: memref<1x640xf32, #tpu.memory_space<vmem>>, %arg7: memref<8x128xf32, #tpu.memory_space<vmem>>) attributes {dimension_semantics = [], scalar_prefetch = 0 : i64, scratch_operands = 0 : i64, tpu.core_type = #tpu.core_type<tc>} {
    %c0 = arith.constant 0 : index
    %c0_0 = arith.constant 0 : index
    %0 = vector.load %arg0[%c0, %c0_0] : memref<18x4xf32, #tpu.memory_space<vmem>>, vector<18x4xf32>
    %c0_1 = arith.constant 0 : index
    %c0_2 = arith.constant 0 : index
    %1 = vector.load %arg1[%c0_1, %c0_2] : memref<4x64xf32, #tpu.memory_space<vmem>>, vector<4x64xf32>
    %cst = arith.constant dense<0.000000e+00> : vector<18x64xf32>
    %2 = tpu.matmul %0, %1, %cst {dimension_numbers = #tpu.dot_dimension_numbers<[1], [0], [0], [1], [0, 0, 1, 1], [], []>} : vector<18x4xf32>, vector<4x64xf32>, vector<18x64xf32> -> vector<18x64xf32>
    %c0_3 = arith.constant 0 : index
    %c0_4 = arith.constant 0 : index
    %3 = vector.load %arg2[%c0_3, %c0_4] : memref<1x64xf32, #tpu.memory_space<vmem>>, vector<1x64xf32>
    %4 = vector.broadcast %3 : vector<1x64xf32> to vector<18x64xf32>
    %5 = arith.addf %2, %4 : vector<18x64xf32>
    %cst_5 = arith.constant 0.000000e+00 : f32
    %6 = vector.broadcast %cst_5 : f32 to vector<18x64xf32>
    %7 = arith.maximumf %5, %6 : vector<18x64xf32>
    %8 = vector.extract_strided_slice %7 {offsets = [0, 0], sizes = [2, 64], strides = [1, 1]} : vector<18x64xf32> to vector<2x64xf32>
    %9 = vector.extract_strided_slice %7 {offsets = [2, 0], sizes = [2, 64], strides = [1, 1]} : vector<18x64xf32> to vector<2x64xf32>
    %10 = vector.extract_strided_slice %7 {offsets = [6, 0], sizes = [2, 64], strides = [1, 1]} : vector<18x64xf32> to vector<2x64xf32>
    %11 = vector.extract_strided_slice %7 {offsets = [8, 0], sizes = [2, 64], strides = [1, 1]} : vector<18x64xf32> to vector<2x64xf32>
    %12 = tpu.concatenate %8, %9, %10, %11 in 1 : vector<2x64xf32>, vector<2x64xf32>, vector<2x64xf32>, vector<2x64xf32> -> vector<2x256xf32>
    %13 = vector.extract_strided_slice %7 {offsets = [2, 0], sizes = [2, 64], strides = [1, 1]} : vector<18x64xf32> to vector<2x64xf32>
    %14 = vector.extract_strided_slice %7 {offsets = [4, 0], sizes = [2, 64], strides = [1, 1]} : vector<18x64xf32> to vector<2x64xf32>
    %15 = vector.extract_strided_slice %7 {offsets = [8, 0], sizes = [2, 64], strides = [1, 1]} : vector<18x64xf32> to vector<2x64xf32>
    %16 = vector.extract_strided_slice %7 {offsets = [10, 0], sizes = [2, 64], strides = [1, 1]} : vector<18x64xf32> to vector<2x64xf32>
    %17 = tpu.concatenate %13, %14, %15, %16 in 1 : vector<2x64xf32>, vector<2x64xf32>, vector<2x64xf32>, vector<2x64xf32> -> vector<2x256xf32>
    %18 = vector.extract_strided_slice %7 {offsets = [6, 0], sizes = [2, 64], strides = [1, 1]} : vector<18x64xf32> to vector<2x64xf32>
    %19 = vector.extract_strided_slice %7 {offsets = [8, 0], sizes = [2, 64], strides = [1, 1]} : vector<18x64xf32> to vector<2x64xf32>
    %20 = vector.extract_strided_slice %7 {offsets = [12, 0], sizes = [2, 64], strides = [1, 1]} : vector<18x64xf32> to vector<2x64xf32>
    %21 = vector.extract_strided_slice %7 {offsets = [14, 0], sizes = [2, 64], strides = [1, 1]} : vector<18x64xf32> to vector<2x64xf32>
    %22 = tpu.concatenate %18, %19, %20, %21 in 1 : vector<2x64xf32>, vector<2x64xf32>, vector<2x64xf32>, vector<2x64xf32> -> vector<2x256xf32>
    %23 = vector.extract_strided_slice %7 {offsets = [8, 0], sizes = [2, 64], strides = [1, 1]} : vector<18x64xf32> to vector<2x64xf32>
    %24 = vector.extract_strided_slice %7 {offsets = [10, 0], sizes = [2, 64], strides = [1, 1]} : vector<18x64xf32> to vector<2x64xf32>
    %25 = vector.extract_strided_slice %7 {offsets = [14, 0], sizes = [2, 64], strides = [1, 1]} : vector<18x64xf32> to vector<2x64xf32>
    %26 = vector.extract_strided_slice %7 {offsets = [16, 0], sizes = [2, 64], strides = [1, 1]} : vector<18x64xf32> to vector<2x64xf32>
    %27 = tpu.concatenate %23, %24, %25, %26 in 1 : vector<2x64xf32>, vector<2x64xf32>, vector<2x64xf32>, vector<2x64xf32> -> vector<2x256xf32>
    %28 = tpu.concatenate %12, %17, %22, %27 in 0 : vector<2x256xf32>, vector<2x256xf32>, vector<2x256xf32>, vector<2x256xf32> -> vector<8x256xf32>
    %c0_6 = arith.constant 0 : index
    %c0_7 = arith.constant 0 : index
    %29 = vector.load %arg3[%c0_6, %c0_7] : memref<256x32xf32, #tpu.memory_space<vmem>>, vector<256x32xf32>
    %cst_8 = arith.constant dense<0.000000e+00> : vector<8x32xf32>
    %30 = tpu.matmul %28, %29, %cst_8 {dimension_numbers = #tpu.dot_dimension_numbers<[1], [0], [0], [1], [0, 0, 1, 1], [], []>} : vector<8x256xf32>, vector<256x32xf32>, vector<8x32xf32> -> vector<8x32xf32>
    %c0_9 = arith.constant 0 : index
    %c0_10 = arith.constant 0 : index
    %31 = vector.load %arg4[%c0_9, %c0_10] : memref<1x32xf32, #tpu.memory_space<vmem>>, vector<1x32xf32>
    %32 = vector.broadcast %31 : vector<1x32xf32> to vector<8x32xf32>
    %33 = arith.addf %30, %32 : vector<8x32xf32>
    %cst_11 = arith.constant 0.000000e+00 : f32
    %34 = vector.broadcast %cst_11 : f32 to vector<8x32xf32>
    %35 = arith.maximumf %33, %34 : vector<8x32xf32>
    %36 = vector.extract_strided_slice %35 {offsets = [0, 0], sizes = [2, 32], strides = [1, 1]} : vector<8x32xf32> to vector<2x32xf32>
    %37 = vector.extract_strided_slice %35 {offsets = [2, 0], sizes = [2, 32], strides = [1, 1]} : vector<8x32xf32> to vector<2x32xf32>
    %38 = vector.extract_strided_slice %35 {offsets = [4, 0], sizes = [2, 32], strides = [1, 1]} : vector<8x32xf32> to vector<2x32xf32>
    %39 = vector.extract_strided_slice %35 {offsets = [6, 0], sizes = [2, 32], strides = [1, 1]} : vector<8x32xf32> to vector<2x32xf32>
    %40 = tpu.concatenate %36, %37, %38, %39 in 1 : vector<2x32xf32>, vector<2x32xf32>, vector<2x32xf32>, vector<2x32xf32> -> vector<2x128xf32>
    %c0_12 = arith.constant 0 : index
    %c0_13 = arith.constant 0 : index
    %41 = vector.load %arg5[%c0_12, %c0_13] : memref<128x640xf32, #tpu.memory_space<vmem>>, vector<128x640xf32>
    %cst_14 = arith.constant dense<0.000000e+00> : vector<2x640xf32>
    %42 = tpu.matmul %40, %41, %cst_14 {dimension_numbers = #tpu.dot_dimension_numbers<[1], [0], [0], [1], [0, 0, 1, 1], [], []>} : vector<2x128xf32>, vector<128x640xf32>, vector<2x640xf32> -> vector<2x640xf32>
    %c0_15 = arith.constant 0 : index
    %c0_16 = arith.constant 0 : index
    %43 = vector.load %arg6[%c0_15, %c0_16] : memref<1x640xf32, #tpu.memory_space<vmem>>, vector<1x640xf32>
    %44 = vector.broadcast %43 : vector<1x640xf32> to vector<2x640xf32>
    %45 = arith.addf %42, %44 : vector<2x640xf32>
    %46 = vector.extract_strided_slice %45 {offsets = [0, 0], sizes = [2, 128], strides = [1, 1]} : vector<2x640xf32> to vector<2x128xf32>
    %47 = vector.extract_strided_slice %45 {offsets = [0, 128], sizes = [2, 128], strides = [1, 1]} : vector<2x640xf32> to vector<2x128xf32>
    %48 = vector.extract_strided_slice %45 {offsets = [0, 256], sizes = [2, 128], strides = [1, 1]} : vector<2x640xf32> to vector<2x128xf32>
    %49 = vector.extract_strided_slice %45 {offsets = [0, 384], sizes = [2, 128], strides = [1, 1]} : vector<2x640xf32> to vector<2x128xf32>
    %50 = vector.extract_strided_slice %45 {offsets = [0, 512], sizes = [2, 128], strides = [1, 1]} : vector<2x640xf32> to vector<2x128xf32>
    %51 = arith.addf %46, %47 : vector<2x128xf32>
    %52 = arith.addf %51, %48 : vector<2x128xf32>
    %53 = arith.addf %52, %49 : vector<2x128xf32>
    %cst_17 = arith.constant 2.500000e-01 : f32
    %54 = vector.broadcast %cst_17 : f32 to vector<2x128xf32>
    %55 = arith.mulf %53, %54 : vector<2x128xf32>
    %56 = arith.subf %50, %55 : vector<2x128xf32>
    %57 = arith.addf %46, %56 : vector<2x128xf32>
    %58 = arith.addf %47, %56 : vector<2x128xf32>
    %59 = arith.addf %48, %56 : vector<2x128xf32>
    %60 = arith.addf %49, %56 : vector<2x128xf32>
    %61 = tpu.concatenate %57, %58, %59, %60 in 0 : vector<2x128xf32>, vector<2x128xf32>, vector<2x128xf32>, vector<2x128xf32> -> vector<8x128xf32>
    %62 = tpu.iota {dimensions = array<i32: 1>} : vector<8x128xi32>
    %c51_i32 = arith.constant 51 : i32
    %63 = vector.broadcast %c51_i32 : i32 to vector<8x128xi32>
    %64 = arith.cmpi slt, %62, %63 : vector<8x128xi32>
    %cst_18 = arith.constant -1.000000e+30 : f32
    %65 = vector.broadcast %cst_18 : f32 to vector<8x128xf32>
    %66 = arith.select %64, %61, %65 : vector<8x128xi1>, vector<8x128xf32>
    %cst_19 = arith.constant dense<0xFF800000> : vector<8xf32>
    %67 = vector.multi_reduction <maximumf>, %66, %cst_19 [1] : vector<8x128xf32> to vector<8xf32>
    %68 = vector.shape_cast %67 : vector<8xf32> to vector<8x1xf32>
    %69 = vector.broadcast %68 : vector<8x1xf32> to vector<8x128xf32>
    %70 = arith.subf %66, %69 : vector<8x128xf32>
    %71 = math.exp %70 : vector<8x128xf32>
    %cst_20 = arith.constant dense<0.000000e+00> : vector<8xf32>
    %72 = vector.multi_reduction <add>, %71, %cst_20 [1] : vector<8x128xf32> to vector<8xf32>
    %73 = vector.shape_cast %72 : vector<8xf32> to vector<8x1xf32>
    %74 = tpu.reciprocal %73 : vector<8x1xf32> -> vector<8x1xf32>
    %75 = vector.broadcast %74 : vector<8x1xf32> to vector<8x128xf32>
    %76 = arith.mulf %71, %75 : vector<8x128xf32>
    %c0_21 = arith.constant 0 : index
    %c0_22 = arith.constant 0 : index
    %77 = vector.load %arg7[%c0_21, %c0_22] : memref<8x128xf32, #tpu.memory_space<vmem>>, vector<8x128xf32>
    tpu.vector_store %arg7[%c0_21, %c0_22], %76 {strides = array<i32>} : memref<8x128xf32, #tpu.memory_space<vmem>>, vector<8x128xf32>,
    return
  }
}

</mosaic_0001>

<llo_original>
// kernel: c51_forward_pallas.1
$region0: #{c51_forward_pallas.1}
  #allocation0 [shape = 'u32[]', space=smem, size = 0x4, offset = 0x4, fixed_abs, tag = 'smem constant byte address 0x4 - core index']
  #allocation1 [shape = 'u32[144,128]{1,0:T(1,128)}', space=vmem, size = 0x12000, scoped, tag = 'internal scratch']
  %s0 = inlined_call_operand.vmem [shape: f32[18,4], index: 0, kind: input, shape index: {}]
  %s1 = inlined_call_operand.vmem [shape: f32[4,64], index: 1, kind: input, shape index: {}]
  %s2 = inlined_call_operand.vmem [shape: f32[1,64], index: 2, kind: input, shape index: {}]
  %s3 = inlined_call_operand.vmem [shape: f32[256,32], index: 3, kind: input, shape index: {}]
  %s4 = inlined_call_operand.vmem [shape: f32[1,32], index: 4, kind: input, shape index: {}]
  %s5 = inlined_call_operand.hbm [shape: f32[128,640], index: 5, kind: input, shape index: {}]
  %s6 = inlined_call_operand.vmem [shape: f32[1,640], index: 6, kind: input, shape index: {}]
  %s7 = inlined_call_operand.vmem [shape: f32[8,128], index: 7, kind: output, shape index: {}]
  %s8 = sld [smem:[#allocation0]]
  $region42: #{c51_forward_pallas.1} parent=0
    _
  %s10 = ssub.s32 1, %s8
  %s11 = scalar_select 0, %s10, %s8
  $region1: #{c51_forward_pallas.1} parent=0
    #allocation2 [shape = 'u8[327680]{0}', space=vmem, size = 0x50000, scoped, tag = 'input window, operand 5, single buffered']
    #allocation3 [shape = 's32[1]{0}', space=sflag, size = 0x4, scoped, tag = 'scoped memory for c51_forward_pallas.1']
    %12 = vsyncpa [#allocation3], 0
    // Predicated region
    $region2: #{c51_forward_pallas.1} parent=1 // pred_check
      _
    $region3: #{c51_forward_pallas.1} parent=1 // pred_check_branch
      %14 = sbr.rel (0) target = $region5
    $region4: #{c51_forward_pallas.1} parent=1 // pred_region
      _
    $region5: #{c51_forward_pallas.1} parent=1 // pred_fallthru
      _
    // Predicated region
    $region6: #{c51_forward_pallas.1} parent=1 // pred_check
      _
    $region7: #{c51_forward_pallas.1} parent=1 // pred_check_branch
      %16 = sbr.rel (0) target = $region9
    $region8: #{c51_forward_pallas.1} parent=1 // pred_region
      _
    $region9: #{c51_forward_pallas.1} parent=1 // pred_fallthru
      _
    // Predicated region
    $region10: #{c51_forward_pallas.1} parent=1 // pred_check
      _
    $region11: #{c51_forward_pallas.1} parent=1 // pred_check_branch
      %18 = sbr.rel (0) target = $region13
    $region12: #{c51_forward_pallas.1} parent=1 // pred_region
      _
    $region13: #{c51_forward_pallas.1} parent=1 // pred_fallthru
      _
    // Predicated region
    $region14: #{c51_forward_pallas.1} parent=1 // pred_check
      _
    $region15: #{c51_forward_pallas.1} parent=1 // pred_check_branch
      %20 = sbr.rel (0) target = $region17
    $region16: #{c51_forward_pallas.1} parent=1 // pred_region
      _
    $region17: #{c51_forward_pallas.1} parent=1 // pred_fallthru
      _
    // Predicated region
    $region18: #{c51_forward_pallas.1} parent=1 // pred_check
      _
    $region19: #{c51_forward_pallas.1} parent=1 // pred_check_branch
      %22 = sbr.rel (0) target = $region21
    $region20: #{c51_forward_pallas.1} parent=1 // pred_region
      _
    $region21: #{c51_forward_pallas.1} parent=1 // pred_fallthru
      _
    // Predicated region
    $region22: #{c51_forward_pallas.1} parent=1 // pred_check
      _
    $region23: #{c51_forward_pallas.1} parent=1 // pred_check_branch
      %24 = sbr.rel (0) target = $region25
    $region24: #{c51_forward_pallas.1} parent=1 // pred_region
      %s26 = ssub.s32 10240, 10240
      %27 = vsyncadd [#allocation3], %s26
      %s28 = sshll.u32 [#allocation2], 4
      %s29 = int_to_ptr.vmem [resolvable:$true] %s28
      %34 = dma.hbm_to_vmem [thread:$0]  %s5, 10240, %s29, [#allocation3], 640, 640, 40
    $region25: #{c51_forward_pallas.1} parent=1 // pred_fallthru
      _
    // Predicated region
    $region26: #{c51_forward_pallas.1} parent=1 // pred_check
      _
    $region27: #{c51_forward_pallas.1} parent=1 // pred_check_branch
      %36 = sbr.rel (0) target = $region29
    $region28: #{c51_forward_pallas.1} parent=1 // pred_region
      _
    $region29: #{c51_forward_pallas.1} parent=1 // pred_fallthru
      _
    // Predicated region
    $region30: #{c51_forward_pallas.1} parent=1 // pred_check
      _
    $region31: #{c51_forward_pallas.1} parent=1 // pred_check_branch
      %38 = sbr.rel (0) target = $region33
    $region32: #{c51_forward_pallas.1} parent=1 // pred_region
      %39 = dma.done [#allocation3], 10240
    $region33: #{c51_forward_pallas.1} parent=1 // pred_fallthru
      _
    %v40 = vld [vmem:[%s0] sm:$0xff]
    %v41 = vld [vmem:[%s0 + $0x8] sm:$0xff]
    %v42 = vld [vmem:[%s0 + $0x10] sm:$0x3]
    %v43 = vld [vmem:[%s1] sm:$0xf]
    %v44 = vld [vmem:[%s2] sm:$0x1]
    %v46 = vlaneseq
    %v47 = vshrl.u32 %v46, 7
    %v48 = vsub.s32 0, %v47
    %v49 = vrot.slane %v44, %v48
    %vm51 = vcmask 31744
    %v53 = vsel %vm51, %v40, 0
    %v56 = vsel %vm51, %v41, 0
    %v59 = vsel %vm51, %v42, 0
    %vm61 = vcmask 1043456
    %v63 = vsel %vm61, %v43, 0
    %65 = vmatprep.subr.mxu0 0.0
    %66 = vmatpush1.msra.mxu0 0.0
    %67 = vmatprep.subr.mxu0 0.0
    %68 = vmatpush1.msra.mxu0 0.0
    %69 = vmatprep.subr.mxu0 0.0
    %70 = vmatpush1.msra.mxu0 0.0
    %71 = vmatprep.subr.mxu0 0.0
    %72 = vmatpush1.msra.mxu0 0.0
    %73 = vmatprep.subr.mxu0 0.0
    %74 = vmatpush1.msra.mxu0 0.0
    %75 = vmatprep.subr.mxu0 0.0
    %76 = vmatpush1.msra.mxu0 0.0
    %77 = vmatprep.subr.mxu0 0.0
    %78 = vmatpush1.msra.mxu0 0.0
    %79 = vmatprep.subr.mxu0 0.0
    %80 = vmatpush1.msra.mxu0 0.0
    %81 = vmatprep.subr.mxu0 0.0
    %82 = vmatpush1.msra.mxu0 0.0
    %83 = vmatprep.subr.mxu0 0.0
    %84 = vmatpush1.msra.mxu0 0.0
    %85 = vmatprep.subr.mxu0 0.0
    %86 = vmatpush1.msra.mxu0 0.0
    %87 = vmatprep.subr.mxu0 0.0
    %88 = vmatpush1.msra.mxu0 0.0
    %89 = vmatprep.subr.mxu0 0.0
    %90 = vmatpush1.msra.mxu0 0.0
    %91 = vmatprep.subr.mxu0 0.0
    %92 = vmatpush1.msra.mxu0 0.0
    %93 = vmatprep.subr.mxu0 0.0
    %94 = vmatpush1.msra.mxu0 0.0
    %95 = vmatprep.subr.mxu0 0.0
    %96 = vmatpush1.msra.mxu0 %v63
    %97 = vmatprep.subr.mxu0 0.0
    %98 = vmatpush2.msra.mxu0 0.0
    %99 = vmatprep.subr.mxu0 0.0
    %100 = vmatpush2.msra.mxu0 0.0
    %101 = vmatprep.subr.mxu0 0.0
    %102 = vmatpush2.msra.mxu0 0.0
    %103 = vmatprep.subr.mxu0 0.0
    %104 = vmatpush2.msra.mxu0 0.0
    %105 = vmatprep.subr.mxu0 0.0
    %106 = vmatpush2.msra.mxu0 0.0
    %107 = vmatprep.subr.mxu0 0.0
    %108 = vmatpush2.msra.mxu0 0.0
    %109 = vmatprep.subr.mxu0 0.0
    %110 = vmatpush2.msra.mxu0 0.0
    %111 = vmatprep.subr.mxu0 0.0
    %112 = vmatpush2.msra.mxu0 0.0
    %113 = vmatprep.subr.mxu0 0.0
    %114 = vmatpush2.msra.mxu0 0.0
    %115 = vmatprep.subr.mxu0 0.0
    %116 = vmatpush2.msra.mxu0 0.0
    %117 = vmatprep.subr.mxu0 0.0
    %118 = vmatpush2.msra.mxu0 0.0
    %119 = vmatprep.subr.mxu0 0.0
    %120 = vmatpush2.msra.mxu0 0.0
    %121 = vmatprep.subr.mxu0 0.0
    %122 = vmatpush2.msra.mxu0 0.0
    %123 = vmatprep.subr.mxu0 0.0
    %124 = vmatpush2.msra.mxu0 0.0
    %125 = vmatprep.subr.mxu0 0.0
    %126 = vmatpush2.msra.mxu0 0.0
    %127 = vmatprep.subr.mxu0 0.0
    %128 = vmatpush2.msra.mxu0 0.0
    %129 = vmatprep.mubr.f32.mxu0 0.0
    %130 = vmatmul.mubr.f32.gmra.mxu0 %v53
    %v131 = vpop.f32.mrf.mxu0
    %v132 = vadd.f32 %v49, %v131
    %v133 = vpop.f32.mrf.mxu0
    %134 = vmatprep.mubr.f32.mxu0 0.0
    %135 = vmatmul.mubr.f32.gmra.mxu0 %v56
    %v136 = vpop.f32.mrf.mxu0
    %v137 = vadd.f32 %v49, %v136
    %v138 = vpop.f32.mrf.mxu0
    %139 = vmatprep.mubr.f32.mxu0 0.0
    %140 = vmatmul.mubr.f32.gmra.mxu0 %v59
    %v141 = vpop.f32.mrf.mxu0
    %v142 = vadd.f32 %v49, %v141
    %v143 = vpop.f32.mrf.mxu0
    %144 = vdwg.mxu0
    %v145 = vmax.f32 %v132, 0.0
    %v146 = vmax.f32 %v137, 0.0
    %v147 = vmax.f32 %v142, 0.0
    %v149 = vrot.slane %v145, 2
    %150 = vrot.lane.b32.xlu0 %v149, 64
    %v151 = vpop.permute.xlu0 %150
    %v153 = vrot.slane %v145, 6
    %156 = vrot.lane.b32.xlu0 %v146, 64
    %v157 = vpop.permute.xlu0 %156
    %vm159 = vcmask 523264
    %v160 = vsel %vm159, %v145, %v151
    %v161 = vsel %vm159, %v153, %v157
    %v162 = vrot.slane %v146, 6
    %v164 = vsel %vm159, %v162, %v157
    %v165 = vrot.slane %v146, 2
    %166 = vrot.lane.b32.xlu0 %v165, 64
    %v167 = vpop.permute.xlu0 %166
    %v169 = vsel %vm159, %v145, %v167
    %171 = vrot.lane.b32.xlu0 %v147, 64
    %v172 = vpop.permute.xlu0 %171
    %v174 = vsel %vm159, %v146, %v167
    %v175 = vsel %vm159, %v162, %v172
    %v178 = vrot.slane %v169, 2
    %v179 = vrot.slane %v164, 2
    %v184 = vrot.slane %v174, 2
    %v185 = vrot.slane %v175, 2
    %vm188 = vcmask 1041408
    %v189 = vsel %vm188, %v161, %v164
    %v190 = vsel %vm61, %v160, %v178
    %v191 = vsel %vm61, %v189, %v179
    %vm192 = vcmask 1045504
    %v193 = vsel %vm192, %v190, %v184
    %v194 = vsel %vm192, %v191, %v185
    %v195 = vld [vmem:[%s3] sm:$0xff]
    %v196 = vld [vmem:[%s3 + $0x8] sm:$0xff]
    %v197 = vld [vmem:[%s3 + $0x10] sm:$0xff]
    %v198 = vld [vmem:[%s3 + $0x18] sm:$0xff]
    %v199 = vld [vmem:[%s3 + $0x20] sm:$0xff]
    %v200 = vld [vmem:[%s3 + $0x28] sm:$0xff]
    %v201 = vld [vmem:[%s3 + $0x30] sm:$0xff]
    %v202 = vld [vmem:[%s3 + $0x38] sm:$0xff]
    %v203 = vld [vmem:[%s3 + $0x40] sm:$0xff]
    %v204 = vld [vmem:[%s3 + $0x48] sm:$0xff]
    %v205 = vld [vmem:[%s3 + $0x50] sm:$0xff]
    %v206 = vld [vmem:[%s3 + $0x58] sm:$0xff]
    %v207 = vld [vmem:[%s3 + $0x60] sm:$0xff]
    %v208 = vld [vmem:[%s3 + $0x68] sm:$0xff]
    %v209 = vld [vmem:[%s3 + $0x70] sm:$0xff]
    %v210 = vld [vmem:[%s3 + $0x78] sm:$0xff]
    %v211 = vld [vmem:[%s3 + $0x80] sm:$0xff]
    %v212 = vld [vmem:[%s3 + $0x88] sm:$0xff]
    %v213 = vld [vmem:[%s3 + $0x90] sm:$0xff]
    %v214 = vld [vmem:[%s3 + $0x98] sm:$0xff]
    %v215 = vld [vmem:[%s3 + $0xa0] sm:$0xff]
    %v216 = vld [vmem:[%s3 + $0xa8] sm:$0xff]
    %v217 = vld [vmem:[%s3 + $0xb0] sm:$0xff]
    %v218 = vld [vmem:[%s3 + $0xb8] sm:$0xff]
    %v219 = vld [vmem:[%s3 + $0xc0] sm:$0xff]
    %v220 = vld [vmem:[%s3 + $0xc8] sm:$0xff]
    %v221 = vld [vmem:[%s3 + $0xd0] sm:$0xff]
    %v222 = vld [vmem:[%s3 + $0xd8] sm:$0xff]
    %v223 = vld [vmem:[%s3 + $0xe0] sm:$0xff]
    %v224 = vld [vmem:[%s3 + $0xe8] sm:$0xff]
    %v225 = vld [vmem:[%s3 + $0xf0] sm:$0xff]
    %v226 = vld [vmem:[%s3 + $0xf8] sm:$0xff]
    %v227 = vld [vmem:[%s4] sm:$0x1]
    %v229 = vlaneseq
    %v230 = vshrl.u32 %v229, 7
    %v231 = vsub.s32 0, %v230
    %v232 = vrot.slane %v227, %v231
    %234 = vmatprep.subr.mxu0 0.0
    %235 = vmatpush1.msra.mxu0 %v210
    %236 = vmatprep.subr.mxu0 0.0
    %237 = vmatpush1.msra.mxu0 %v209
    %238 = vmatprep.subr.mxu0 0.0
    %239 = vmatpush1.msra.mxu0 %v208
    %240 = vmatprep.subr.mxu0 0.0
    %241 = vmatpush1.msra.mxu0 %v207
    %242 = vmatprep.subr.mxu0 0.0
    %243 = vmatpush1.msra.mxu0 %v206
    %244 = vmatprep.subr.mxu0 0.0
    %245 = vmatpush1.msra.mxu0 %v205
    %246 = vmatprep.subr.mxu0 0.0
    %247 = vmatpush1.msra.mxu0 %v204
    %248 = vmatprep.subr.mxu0 0.0
    %249 = vmatpush1.msra.mxu0 %v203
    %250 = vmatprep.subr.mxu0 0.0
    %251 = vmatpush1.msra.mxu0 %v202
    %252 = vmatprep.subr.mxu0 0.0
    %253 = vmatpush1.msra.mxu0 %v201
    %254 = vmatprep.subr.mxu0 0.0
    %255 = vmatpush1.msra.mxu0 %v200
    %256 = vmatprep.subr.mxu0 0.0
    %257 = vmatpush1.msra.mxu0 %v199
    %258 = vmatprep.subr.mxu0 0.0
    %259 = vmatpush1.msra.mxu0 %v198
    %260 = vmatprep.subr.mxu0 0.0
    %261 = vmatpush1.msra.mxu0 %v197
    %262 = vmatprep.subr.mxu0 0.0
    %263 = vmatpush1.msra.mxu0 %v196
    %264 = vmatprep.subr.mxu0 0.0
    %265 = vmatpush1.msra.mxu0 %v195
    %266 = vmatprep.subr.mxu0 0.0
    %267 = vmatpush2.msra.mxu0 %v226
    %268 = vmatprep.subr.mxu0 0.0
    %269 = vmatpush2.msra.mxu0 %v225
    %270 = vmatprep.subr.mxu0 0.0
    %271 = vmatpush2.msra.mxu0 %v224
    %272 = vmatprep.subr.mxu0 0.0
    %273 = vmatpush2.msra.mxu0 %v223
    %274 = vmatprep.subr.mxu0 0.0
    %275 = vmatpush2.msra.mxu0 %v222
    %276 = vmatprep.subr.mxu0 0.0
    %277 = vmatpush2.msra.mxu0 %v221
    %278 = vmatprep.subr.mxu0 0.0
    %279 = vmatpush2.msra.mxu0 %v220
    %280 = vmatprep.subr.mxu0 0.0
    %281 = vmatpush2.msra.mxu0 %v219
    %282 = vmatprep.subr.mxu0 0.0
    %283 = vmatpush2.msra.mxu0 %v218
    %284 = vmatprep.subr.mxu0 0.0
    %285 = vmatpush2.msra.mxu0 %v217
    %286 = vmatprep.subr.mxu0 0.0
    %287 = vmatpush2.msra.mxu0 %v216
    %288 = vmatprep.subr.mxu0 0.0
    %289 = vmatpush2.msra.mxu0 %v215
    %290 = vmatprep.subr.mxu0 0.0
    %291 = vmatpush2.msra.mxu0 %v214
    %292 = vmatprep.subr.mxu0 0.0
    %293 = vmatpush2.msra.mxu0 %v213
    %294 = vmatprep.subr.mxu0 0.0
    %295 = vmatpush2.msra.mxu0 %v212
    %296 = vmatprep.subr.mxu0 0.0
    %297 = vmatpush2.msra.mxu0 %v211
    %298 = vmatprep.mubr.f32.mxu0 %v194
    %299 = vmatmul.mubr.f32.gmra.mxu0 %v193
    %v300 = vpop.f32.mrf.mxu0
    %v301 = vadd.f32 %v232, %v300
    %v302 = vpop.f32.mrf.mxu0
    %303 = vdwg.mxu0
    %v304 = vmax.f32 %v301, 0.0
    %v306 = vrot.slane %v304, 2
    %307 = vrot.lane.b32.xlu0 %v306, 32
    %v308 = vpop.permute.xlu0 %307
    %v310 = vrot.slane %v304, 4
    %311 = vrot.lane.b32.xlu0 %v310, 64
    %v312 = vpop.permute.xlu0 %311
    %v314 = vrot.slane %v304, 6
    %315 = vrot.lane.b32.xlu0 %v314, 96
    %v316 = vpop.permute.xlu0 %315
    %vm318 = vcmask 261120
    %v319 = vsel %vm318, %v304, %v308
    %v320 = vsel %vm159, %v319, %v312
    %vm321 = vcmask 785408
    %v322 = vsel %vm321, %v320, %v316
    %v323 = vld [vmem:[#allocation2] sm:$0xff]
    %v324 = vld [vmem:[#allocation2 + $0x8] sm:$0xff]
    %v325 = vld [vmem:[#allocation2 + $0x10] sm:$0xff]
    %v326 = vld [vmem:[#allocation2 + $0x18] sm:$0xff]
    %v327 = vld [vmem:[#allocation2 + $0x20] sm:$0xff]
    %v328 = vld [vmem:[#allocation2 + $0x28] sm:$0xff]
    %v329 = vld [vmem:[#allocation2 + $0x30] sm:$0xff]
    %v330 = vld [vmem:[#allocation2 + $0x38] sm:$0xff]
    %v331 = vld [vmem:[#allocation2 + $0x40] sm:$0xff]
    %v332 = vld [vmem:[#allocation2 + $0x48] sm:$0xff]
    %v333 = vld [vmem:[#allocation2 + $0x50] sm:$0xff]
    %v334 = vld [vmem:[#allocation2 + $0x58] sm:$0xff]
    %v335 = vld [vmem:[#allocation2 + $0x60] sm:$0xff]
    %v336 = vld [vmem:[#allocation2 + $0x68] sm:$0xff]
    %v337 = vld [vmem:[#allocation2 + $0x70] sm:$0xff]
    %v338 = vld [vmem:[#allocation2 + $0x78] sm:$0xff]
    %v339 = vld [vmem:[#allocation2 + $0x80] sm:$0xff]
    %v340 = vld [vmem:[#allocation2 + $0x88] sm:$0xff]
    %v341 = vld [vmem:[#allocation2 + $0x90] sm:$0xff]
    %v342 = vld [vmem:[#allocation2 + $0x98] sm:$0xff]
    %v343 = vld [vmem:[#allocation2 + $0xa0] sm:$0xff]
    %v344 = vld [vmem:[#allocation2 + $0xa8] sm:$0xff]
    %v345 = vld [vmem:[#allocation2 + $0xb0] sm:$0xff]
    %v346 = vld [vmem:[#allocation2 + $0xb8] sm:$0xff]
    %v347 = vld [vmem:[#allocation2 + $0xc0] sm:$0xff]
    %v348 = vld [vmem:[#allocation2 + $0xc8] sm:$0xff]
    %v349 = vld [vmem:[#allocation2 + $0xd0] sm:$0xff]
    %v350 = vld [vmem:[#allocation2 + $0xd8] sm:$0xff]
    %v351 = vld [vmem:[#allocation2 + $0xe0] sm:$0xff]
    %v352 = vld [vmem:[#allocation2 + $0xe8] sm:$0xff]
    %v353 = vld [vmem:[#allocation2 + $0xf0] sm:$0xff]
    %v354 = vld [vmem:[#allocation2 + $0xf8] sm:$0xff]
    %v355 = vld [vmem:[#allocation2 + $0x100] sm:$0xff]
    %v356 = vld [vmem:[#allocation2 + $0x108] sm:$0xff]
    %v357 = vld [vmem:[#allocation2 + $0x110] sm:$0xff]
    %v358 = vld [vmem:[#allocation2 + $0x118] sm:$0xff]
    %v359 = vld [vmem:[#allocation2 + $0x120] sm:$0xff]
    %v360 = vld [vmem:[#allocation2 + $0x128] sm:$0xff]
    %v361 = vld [vmem:[#allocation2 + $0x130] sm:$0xff]
    %v362 = vld [vmem:[#allocation2 + $0x138] sm:$0xff]
    %v363 = vld [vmem:[#allocation2 + $0x140] sm:$0xff]
    %v364 = vld [vmem:[#allocation2 + $0x148] sm:$0xff]
    %v365 = vld [vmem:[#allocation2 + $0x150] sm:$0xff]
    %v366 = vld [vmem:[#allocation2 + $0x158] sm:$0xff]
    %v367 = vld [vmem:[#allocation2 + $0x160] sm:$0xff]
    %v368 = vld [vmem:[#allocation2 + $0x168] sm:$0xff]
    %v369 = vld [vmem:[#allocation2 + $0x170] sm:$0xff]
    %v370 = vld [vmem:[#allocation2 + $0x178] sm:$0xff]
    %v371 = vld [vmem:[#allocation2 + $0x180] sm:$0xff]
    %v372 = vld [vmem:[#allocation2 + $0x188] sm:$0xff]
    %v373 = vld [vmem:[#allocation2 + $0x190] sm:$0xff]
    %v374 = vld [vmem:[#allocation2 + $0x198] sm:$0xff]
    %v375 = vld [vmem:[#allocation2 + $0x1a0] sm:$0xff]
    %v376 = vld [vmem:[#allocation2 + $0x1a8] sm:$0xff]
    %v377 = vld [vmem:[#allocation2 + $0x1b0] sm:$0xff]
    %v378 = vld [vmem:[#allocation2 + $0x1b8] sm:$0xff]
    %v379 = vld [vmem:[#allocation2 + $0x1c0] sm:$0xff]
    %v380 = vld [vmem:[#allocation2 + $0x1c8] sm:$0xff]
    %v381 = vld [vmem:[#allocation2 + $0x1d0] sm:$0xff]
    %v382 = vld [vmem:[#allocation2 + $0x1d8] sm:$0xff]
    %v383 = vld [vmem:[#allocation2 + $0x1e0] sm:$0xff]
    %v384 = vld [vmem:[#allocation2 + $0x1e8] sm:$0xff]
    %v385 = vld [vmem:[#allocation2 + $0x1f0] sm:$0xff]
    %v386 = vld [vmem:[#allocation2 + $0x1f8] sm:$0xff]
    %v387 = vld [vmem:[#allocation2 + $0x200] sm:$0xff]
    %v388 = vld [vmem:[#allocation2 + $0x208] sm:$0xff]
    %v389 = vld [vmem:[#allocation2 + $0x210] sm:$0xff]
    %v390 = vld [vmem:[#allocation2 + $0x218] sm:$0xff]
    %v391 = vld [vmem:[#allocation2 + $0x220] sm:$0xff]
    %v392 = vld [vmem:[#allocation2 + $0x228] sm:$0xff]
    %v393 = vld [vmem:[#allocation2 + $0x230] sm:$0xff]
    %v394 = vld [vmem:[#allocation2 + $0x238] sm:$0xff]
    %v395 = vld [vmem:[#allocation2 + $0x240] sm:$0xff]
    %v396 = vld [vmem:[#allocation2 + $0x248] sm:$0xff]
    %v397 = vld [vmem:[#allocation2 + $0x250] sm:$0xff]
    %v398 = vld [vmem:[#allocation2 + $0x258] sm:$0xff]
    %v399 = vld [vmem:[#allocation2 + $0x260] sm:$0xff]
    %v400 = vld [vmem:[#allocation2 + $0x268] sm:$0xff]
    %v401 = vld [vmem:[#allocation2 + $0x270] sm:$0xff]
    %v402 = vld [vmem:[#allocation2 + $0x278] sm:$0xff]
    %v403 = vld [vmem:[%s6] sm:$0x1f]
    %v405 = vlaneseq
    %v406 = vshrl.u32 %v405, 7
    %v407 = vsub.s32 0, %v406
    %v408 = vrot.slane %v403, %v407
    %v409 = vlaneseq
    %v410 = vshrl.u32 %v409, 7
    %v411 = vsub.s32 1, %v410
    %v412 = vrot.slane %v403, %v411
    %v413 = vlaneseq
    %v414 = vshrl.u32 %v413, 7
    %v415 = vsub.s32 2, %v414
    %v416 = vrot.slane %v403, %v415
    %v417 = vlaneseq
    %v418 = vshrl.u32 %v417, 7
    %v419 = vsub.s32 3, %v418
    %v420 = vrot.slane %v403, %v419
    %v421 = vlaneseq
    %v422 = vshrl.u32 %v421, 7
    %v423 = vsub.s32 4, %v422
    %v424 = vrot.slane %v403, %v423
    %430 = vmatprep.subr.mxu0 %v399
    %431 = vmatpush1.msra.mxu0 %v398
    %432 = vmatprep.subr.mxu0 %v394
    %433 = vmatpush1.msra.mxu0 %v393
    %434 = vmatprep.subr.mxu0 %v389
    %435 = vmatpush1.msra.mxu0 %v388
    %436 = vmatprep.subr.mxu0 %v384
    %437 = vmatpush1.msra.mxu0 %v383
    %438 = vmatprep.subr.mxu0 %v379
    %439 = vmatpush1.msra.mxu0 %v378
    %440 = vmatprep.subr.mxu0 %v374
    %441 = vmatpush1.msra.mxu0 %v373
    %442 = vmatprep.subr.mxu0 %v369
    %443 = vmatpush1.msra.mxu0 %v368
    %444 = vmatprep.subr.mxu0 %v364
    %445 = vmatpush1.msra.mxu0 %v363
    %446 = vmatprep.subr.mxu0 %v359
    %447 = vmatpush1.msra.mxu0 %v358
    %448 = vmatprep.subr.mxu0 %v354
    %449 = vmatpush1.msra.mxu0 %v353
    %450 = vmatprep.subr.mxu0 %v349
    %451 = vmatpush1.msra.mxu0 %v348
    %452 = vmatprep.subr.mxu0 %v344
    %453 = vmatpush1.msra.mxu0 %v343
    %454 = vmatprep.subr.mxu0 %v339
    %455 = vmatpush1.msra.mxu0 %v338
    %456 = vmatprep.subr.mxu0 %v334
    %457 = vmatpush1.msra.mxu0 %v333
    %458 = vmatprep.subr.mxu0 %v329
    %459 = vmatpush1.msra.mxu0 %v328
    %460 = vmatprep.subr.mxu0 %v324
    %461 = vmatpush1.msra.mxu0 %v323
    %462 = vmatprep.subr.mxu0 0.0
    %463 = vmatpush2.msra.mxu0 0.0
    %464 = vmatprep.subr.mxu0 0.0
    %465 = vmatpush2.msra.mxu0 0.0
    %466 = vmatprep.subr.mxu0 0.0
    %467 = vmatpush2.msra.mxu0 0.0
    %468 = vmatprep.subr.mxu0 0.0
    %469 = vmatpush2.msra.mxu0 0.0
    %470 = vmatprep.subr.mxu0 0.0
    %471 = vmatpush2.msra.mxu0 0.0
    %472 = vmatprep.subr.mxu0 0.0
    %473 = vmatpush2.msra.mxu0 0.0
    %474 = vmatprep.subr.mxu0 0.0
    %475 = vmatpush2.msra.mxu0 0.0
    %476 = vmatprep.subr.mxu0 0.0
    %477 = vmatpush2.msra.mxu0 0.0
    %478 = vmatprep.subr.mxu0 0.0
    %479 = vmatpush2.msra.mxu0 0.0
    %480 = vmatprep.subr.mxu0 0.0
    %481 = vmatpush2.msra.mxu0 0.0
    %482 = vmatprep.subr.mxu0 0.0
    %483 = vmatpush2.msra.mxu0 0.0
    %484 = vmatprep.subr.mxu0 0.0
    %485 = vmatpush2.msra.mxu0 0.0
    %486 = vmatprep.subr.mxu0 0.0
    %487 = vmatpush2.msra.mxu0 0.0
    %488 = vmatprep.subr.mxu0 0.0
    %489 = vmatpush2.msra.mxu0 0.0
    %490 = vmatprep.subr.mxu0 0.0
    %491 = vmatpush2.msra.mxu0 0.0
    %492 = vmatprep.subr.mxu0 0.0
    %493 = vmatpush2.msra.mxu0 0.0
    %494 = vmatprep.mubr.f32.mxu0 0.0
    %495 = vmatmul.mubr.f32.gmra.mxu0 %v322
    %v496 = vpop.f32.mrf.mxu0
    %v497 = vadd.f32 %v408, %v496
    %v498 = vpop.f32.mrf.mxu0
    %v499 = vadd.f32 %v412, %v498
    %500 = vdwg.mxu0
    %501 = vmatprep.subr.mxu0 %v401
    %502 = vmatpush1.msra.mxu0 %v400
    %503 = vmatprep.subr.mxu0 %v396
    %504 = vmatpush1.msra.mxu0 %v395
    %505 = vmatprep.subr.mxu0 %v391
    %506 = vmatpush1.msra.mxu0 %v390
    %507 = vmatprep.subr.mxu0 %v386
    %508 = vmatpush1.msra.mxu0 %v385
    %509 = vmatprep.subr.mxu0 %v381
    %510 = vmatpush1.msra.mxu0 %v380
    %511 = vmatprep.subr.mxu0 %v376
    %512 = vmatpush1.msra.mxu0 %v375
    %513 = vmatprep.subr.mxu0 %v371
    %514 = vmatpush1.msra.mxu0 %v370
    %515 = vmatprep.subr.mxu0 %v366
    %516 = vmatpush1.msra.mxu0 %v365
    %517 = vmatprep.subr.mxu0 %v361
    %518 = vmatpush1.msra.mxu0 %v360
    %519 = vmatprep.subr.mxu0 %v356
    %520 = vmatpush1.msra.mxu0 %v355
    %521 = vmatprep.subr.mxu0 %v351
    %522 = vmatpush1.msra.mxu0 %v350
    %523 = vmatprep.subr.mxu0 %v346
    %524 = vmatpush1.msra.mxu0 %v345
    %525 = vmatprep.subr.mxu0 %v341
    %526 = vmatpush1.msra.mxu0 %v340
    %527 = vmatprep.subr.mxu0 %v336
    %528 = vmatpush1.msra.mxu0 %v335
    %529 = vmatprep.subr.mxu0 %v331
    %530 = vmatpush1.msra.mxu0 %v330
    %531 = vmatprep.subr.mxu0 %v326
    %532 = vmatpush1.msra.mxu0 %v325
    %533 = vmatprep.subr.mxu0 0.0
    %534 = vmatpush2.msra.mxu0 0.0
    %535 = vmatprep.subr.mxu0 0.0
    %536 = vmatpush2.msra.mxu0 0.0
    %537 = vmatprep.subr.mxu0 0.0
    %538 = vmatpush2.msra.mxu0 0.0
    %539 = vmatprep.subr.mxu0 0.0
    %540 = vmatpush2.msra.mxu0 0.0
    %541 = vmatprep.subr.mxu0 0.0
    %542 = vmatpush2.msra.mxu0 0.0
    %543 = vmatprep.subr.mxu0 0.0
    %544 = vmatpush2.msra.mxu0 0.0
    %545 = vmatprep.subr.mxu0 0.0
    %546 = vmatpush2.msra.mxu0 0.0
    %547 = vmatprep.subr.mxu0 0.0
    %548 = vmatpush2.msra.mxu0 0.0
    %549 = vmatprep.subr.mxu0 0.0
    %550 = vmatpush2.msra.mxu0 0.0
    %551 = vmatprep.subr.mxu0 0.0
    %552 = vmatpush2.msra.mxu0 0.0
    %553 = vmatprep.subr.mxu0 0.0
    %554 = vmatpush2.msra.mxu0 0.0
    %555 = vmatprep.subr.mxu0 0.0
    %556 = vmatpush2.msra.mxu0 0.0
    %557 = vmatprep.subr.mxu0 0.0
    %558 = vmatpush2.msra.mxu0 0.0
    %559 = vmatprep.subr.mxu0 0.0
    %560 = vmatpush2.msra.mxu0 0.0
    %561 = vmatprep.subr.mxu0 0.0
    %562 = vmatpush2.msra.mxu0 0.0
    %563 = vmatprep.subr.mxu0 0.0
    %564 = vmatpush2.msra.mxu0 0.0
    %565 = vmatprep.mubr.f32.mxu0 0.0
    %566 = vmatmul.mubr.f32.gmra.mxu0 %v322
    %v567 = vpop.f32.mrf.mxu0
    %v568 = vadd.f32 %v416, %v567
    %v569 = vpop.f32.mrf.mxu0
    %v570 = vadd.f32 %v420, %v569
    %571 = vdwg.mxu0
    %572 = vmatprep.subr.mxu0 0.0
    %573 = vmatpush1.msra.mxu0 %v402
    %574 = vmatprep.subr.mxu0 0.0
    %575 = vmatpush1.msra.mxu0 %v397
    %576 = vmatprep.subr.mxu0 0.0
    %577 = vmatpush1.msra.mxu0 %v392
    %578 = vmatprep.subr.mxu0 0.0
    %579 = vmatpush1.msra.mxu0 %v387
    %580 = vmatprep.subr.mxu0 0.0
    %581 = vmatpush1.msra.mxu0 %v382
    %582 = vmatprep.subr.mxu0 0.0
    %583 = vmatpush1.msra.mxu0 %v377
    %584 = vmatprep.subr.mxu0 0.0
    %585 = vmatpush1.msra.mxu0 %v372
    %586 = vmatprep.subr.mxu0 0.0
    %587 = vmatpush1.msra.mxu0 %v367
    %588 = vmatprep.subr.mxu0 0.0
    %589 = vmatpush1.msra.mxu0 %v362
    %590 = vmatprep.subr.mxu0 0.0
    %591 = vmatpush1.msra.mxu0 %v357
    %592 = vmatprep.subr.mxu0 0.0
    %593 = vmatpush1.msra.mxu0 %v352
    %594 = vmatprep.subr.mxu0 0.0
    %595 = vmatpush1.msra.mxu0 %v347
    %596 = vmatprep.subr.mxu0 0.0
    %597 = vmatpush1.msra.mxu0 %v342
    %598 = vmatprep.subr.mxu0 0.0
    %599 = vmatpush1.msra.mxu0 %v337
    %600 = vmatprep.subr.mxu0 0.0
    %601 = vmatpush1.msra.mxu0 %v332
    %602 = vmatprep.subr.mxu0 0.0
    %603 = vmatpush1.msra.mxu0 %v327
    %604 = vmatprep.subr.mxu0 0.0
    %605 = vmatpush2.msra.mxu0 0.0
    %606 = vmatprep.subr.mxu0 0.0
    %607 = vmatpush2.msra.mxu0 0.0
    %608 = vmatprep.subr.mxu0 0.0
    %609 = vmatpush2.msra.mxu0 0.0
    %610 = vmatprep.subr.mxu0 0.0
    %611 = vmatpush2.msra.mxu0 0.0
    %612 = vmatprep.subr.mxu0 0.0
    %613 = vmatpush2.msra.mxu0 0.0
    %614 = vmatprep.subr.mxu0 0.0
    %615 = vmatpush2.msra.mxu0 0.0
    %616 = vmatprep.subr.mxu0 0.0
    %617 = vmatpush2.msra.mxu0 0.0
    %618 = vmatprep.subr.mxu0 0.0
    %619 = vmatpush2.msra.mxu0 0.0
    %620 = vmatprep.subr.mxu0 0.0
    %621 = vmatpush2.msra.mxu0 0.0
    %622 = vmatprep.subr.mxu0 0.0
    %623 = vmatpush2.msra.mxu0 0.0
    %624 = vmatprep.subr.mxu0 0.0
    %625 = vmatpush2.msra.mxu0 0.0
    %626 = vmatprep.subr.mxu0 0.0
    %627 = vmatpush2.msra.mxu0 0.0
    %628 = vmatprep.subr.mxu0 0.0
    %629 = vmatpush2.msra.mxu0 0.0
    %630 = vmatprep.subr.mxu0 0.0
    %631 = vmatpush2.msra.mxu0 0.0
    %632 = vmatprep.subr.mxu0 0.0
    %633 = vmatpush2.msra.mxu0 0.0
    %634 = vmatprep.subr.mxu0 0.0
    %635 = vmatpush2.msra.mxu0 0.0
    %636 = vmatprep.mubr.f32.mxu0 0.0
    %637 = vmatmul.mubr.f32.gmra.mxu0 %v322
    %v638 = vpop.f32.mrf.mxu0
    %v639 = vadd.f32 %v424, %v638
    %v640 = vpop.f32.mrf.mxu0
    %641 = vdwg.mxu0
    %v642 = vadd.f32 %v497, %v499
    %v643 = vadd.f32 %v642, %v568
    %v644 = vadd.f32 %v643, %v570
    %v645 = vmul.f32 %v644, 0.25
    %v646 = vsub.f32 %v639, %v645
    %v647 = vadd.f32 %v497, %v646
    %v648 = vadd.f32 %v499, %v646
    %v649 = vadd.f32 %v568, %v646
    %v650 = vadd.f32 %v570, %v646
    %v652 = vrot.slane %v648, 6
    %v655 = vrot.slane %v649, 4
    %v658 = vrot.slane %v650, 2
    %v660 = vsel %vm188, %v647, %v652
    %v661 = vsel %vm61, %v660, %v655
    %v662 = vsel %vm192, %v661, %v658
    %v663 = vlaneseq
    %v664 = vand.u32 %v663, 127
    %vm665 = vcmp.lt.s32.totalorder %v664, 51
    %v666 = vsel %vm665, %v662, -1e+30
    %667 = vmax.xlane.f32.xlu0 %v666
    %v668 = vpop.xlane.xlu0 %667
    %v669 = vsub.f32 %v666, %v668
    %v670 = vmul.f32 %v669, 1.442695
    %v671 = vpow.pop %v670
    %672 = vadd.xlane.f32.xlu0 %v671
    %v673 = vpop.xlane.xlu0 %672
    %v674 = vrcp.pop %v673
    %v675 = vmul.f32 %v671, %v674
    %676 = vst [vmem:[%s7] sm:$0xff] %v675
    // Predicated region
    $region34: #{c51_forward_pallas.1} parent=1 // pred_check
      _
    $region35: #{c51_forward_pallas.1} parent=1 // pred_check_branch
      %678 = sbr.rel (0) target = $region37
    $region36: #{c51_forward_pallas.1} parent=1 // pred_region
      _
    $region37: #{c51_forward_pallas.1} parent=1 // pred_fallthru
      _
    // Predicated region
    $region38: #{c51_forward_pallas.1} parent=1 // pred_check
      _
    $region39: #{c51_forward_pallas.1} parent=1 // pred_check_branch
      %680 = sbr.rel (0) target = $region41
    $region40: #{c51_forward_pallas.1} parent=1 // pred_region
      _
    $region41: #{c51_forward_pallas.1} parent=1 // pred_fallthru
      _
    %681 = vsyncpa [#allocation3], 1

</llo_original>
